<compile_context>
chip_gen: v7x
topology: tpu7x:2x2x1
jax: 0.10.0
libtpu: 0.0.40
codegen_flags: <defaults>
</compile_context>

<pallas_src>
import functools

import jax
import jax.numpy as jnp
from jax import lax
from jax.experimental import pallas as pl
from jax.experimental.pallas import tpu as pltpu


def _self_attn_kernel(gamma_ref, x_ref, k_ref, v_ref, wq_ref, bq_ref,
                      *out_refs, with_attention):
    # Per grid step (b, qi):
    #   gamma_ref   : SMEM (1,)        gamma scalar
    #   x_ref       : (1, C, TQ)       query pixel tile, channel-major (also residual)
    #   k_ref       : (1, C8, N)       key projection, per-batch (precomputed)
    #   v_ref       : (1, C, N)        value projection, per-batch (precomputed)
    #   wq_ref      : (C8, C)          query 1x1-conv weight (MXU dtype)
    #   bq_ref      : (C8, 1)          query 1x1-conv bias (f32)
    #   out_refs[0] : (1, C, TQ)       output tile, channel-major (lane-dense)
    #   out_refs[1] : (1, TQ, N)       attention tile (only if with_attention)
    x_tile = x_ref[0]                                   # (C, TQ)
    k_full = k_ref[0]                                   # (C8, N)
    v_full = v_ref[0]                                   # (C, N)
    gamma = gamma_ref[0]

    # Query projection for this tile (channel-major): q = Wq x + bq  -> (C8, TQ)
    q = jnp.dot(wq_ref[...], x_tile.astype(wq_ref.dtype),
                preferred_element_type=jnp.float32) + bq_ref[...]

    # energy[i, j] = q[:, i] . k[:, j]  -> (TQ, N); contraction over C8.
    energy = lax.dot_general(q.astype(k_full.dtype), k_full,
                             (((0,), (0,)), ((), ())),
                             preferred_element_type=jnp.float32)

    # Numerically-stable softmax over the key axis (lane axis); f32 math.
    # Exact normalization: the divide only touches a (TQ, 1) column and the
    # attention map is returned to the caller.
    m_max = jnp.max(energy, axis=-1, keepdims=True)
    e = jnp.exp(energy - m_max)
    denom = jnp.sum(e, axis=-1, keepdims=True)
    attn = e * (1.0 / denom)                            # (TQ, N), f32

    # out_cm[c, i] = sum_j v[c, j] * attn[i, j]  (trans_b contraction; no attn.T copy)
    out_cm = lax.dot_general(v_full, attn.astype(v_full.dtype),
                             (((1,), (1,)), ((), ())),
                             preferred_element_type=jnp.float32)    # (C, TQ)

    out_refs[0][0] = (gamma * out_cm
                      + x_tile.astype(jnp.float32)).astype(out_refs[0].dtype)
    if with_attention:
        out_refs[1][0] = attn.astype(out_refs[1].dtype)


def _preferred_tile_q():
    # v6e/v7x MXU is 256-wide; v5e is 128-wide (and has the tightest HBM BW).
    try:
        kind = jax.devices()[0].device_kind.lower()
    except Exception:
        kind = ""
    if "v5 lite" in kind or "v5lite" in kind or "v5e" in kind:
        return 128
    return 256


def _pick_tile_q(n, preferred):
    # TILE_Q must divide N and be a multiple of 128 (lane-dense output stores)
    # unless it covers the whole image.
    for t in (preferred, 128):
        if n >= t and n % t == 0:
            return t
    return n


def _vmem_capacity_bytes():
    try:
        info = pltpu.get_tpu_info()
        cap = getattr(info, "vmem_capacity_bytes", None)
        if cap:
            return int(cap)
    except Exception:
        pass
    return 64 << 20   # conservative default (v7x per-TensorCore VMEM)


def self_attn_forward(x_nchw, wq, bq, wk, bk, wv, bv, gamma, *,
                      with_attention=True, mxu_dtype=jnp.float32,
                      attn_dtype=jnp.float32):
    """x_nchw: (B, C, W, H). Returns (out (B,C,W,H), attention (B,N,N)) or just out."""
    B, C, W, H = x_nchw.shape
    N = W * H
    C8 = wq.shape[0]

    # Channel-major flattening (pure reshape, PyTorch layout). No transpose.
    x_cm = x_nchw.reshape(B, C, N)

    # Batch-invariant projections hoisted out of the query-tile loop:
    # key/value 1x1 convs done once per image as batched XLA matmuls.
    k_cm = (jnp.einsum('oc,bcn->bon', wk, x_cm)
            + bk[None, :, None]).astype(mxu_dtype)                  # (B, C8, N)
    v_cm = (jnp.einsum('oc,bcn->bon', wv, x_cm)
            + bv[None, :, None]).astype(mxu_dtype)                  # (B, C, N)
    wq_mx = wq.astype(mxu_dtype)
    bq_col = bq.reshape(C8, 1).astype(jnp.float32)
    gamma_s = gamma.reshape(1).astype(jnp.float32)                  # SMEM scalar

    TQ = _pick_tile_q(N, _preferred_tile_q())
    grid = (B, N // TQ)

    # Per-step VMEM footprint: double-buffered inputs/outputs + f32 temporaries.
    x_bytes = jnp.dtype(x_nchw.dtype).itemsize
    mxu_bytes = jnp.dtype(mxu_dtype).itemsize
    attn_bytes = jnp.dtype(attn_dtype).itemsize
    vmem_est = (2 * C * TQ * x_bytes                 # x query tile
                + 2 * C8 * N * mxu_bytes             # keys (per batch)
                + 2 * C * N * mxu_bytes              # values (per batch)
                + 2 * (C8 * C + C8) * mxu_bytes      # Wq, bq
                + 2 * C * TQ * x_bytes               # main output tile
                + (2 * TQ * N * attn_bytes if with_attention else 0)
                + 4 * TQ * N * 4                     # energy/exp/attn f32 temps
                + 4 * C * TQ * 4)                    # q / out_cm temps + slack
    vmem_cap = (_vmem_capacity_bytes() * 3) // 4     # <= ~48 MiB on v7x
    vmem_limit = int(min(max(vmem_est + (4 << 20), 16 << 20), vmem_cap))

    out_shapes = [jax.ShapeDtypeStruct((B, C, N), x_nchw.dtype)]
    out_specs = [pl.BlockSpec((1, C, TQ), lambda b, qi: (b, 0, qi))]
    if with_attention:
        out_shapes.append(jax.ShapeDtypeStruct((B, N, N), attn_dtype))
        out_specs.append(pl.BlockSpec((1, TQ, N), lambda b, qi: (b, qi, 0)))

    kernel = functools.partial(_self_attn_kernel, with_attention=with_attention)

    # TODO(synk): for SAGAN-scale shapes (C>=512, N>=4096) add a third
    # "arbitrary" grid axis over key tiles with an online-softmax accumulator
    # so keys/values need not stay fully resident in VMEM (v7x 64 MiB budget).
    results = pl.pallas_call(
        kernel,
        out_shape=tuple(out_shapes),
        grid_spec=pltpu.PrefetchScalarGridSpec(
            num_scalar_prefetch=0,
            grid=grid,
            in_specs=[
                pl.BlockSpec(memory_space=pltpu.MemorySpace.SMEM),    # gamma
                pl.BlockSpec((1, C, TQ), lambda b, qi: (b, 0, qi)),   # x tile (channel-major)
                pl.BlockSpec((1, C8, N), lambda b, qi: (b, 0, 0)),    # keys
                pl.BlockSpec((1, C, N), lambda b, qi: (b, 0, 0)),     # values
                pl.BlockSpec((C8, C), lambda b, qi: (0, 0)),          # Wq
                pl.BlockSpec((C8, 1), lambda b, qi: (0, 0)),          # bq
            ],
            out_specs=out_specs,
        ),
        compiler_params=pltpu.CompilerParams(
            dimension_semantics=("parallel", "parallel"),
            vmem_limit_bytes=vmem_limit),
    )(gamma_s, x_cm, k_cm, v_cm, wq_mx, bq_col)

    if with_attention:
        out_cm, attn = results
        return out_cm.reshape(B, C, W, H), attn
    (out_cm,) = results
    return out_cm.reshape(B, C, W, H)


def self_attn_reference(x_nchw, wq, bq, wk, bk, wv, bv, gamma):
    """Pure-JAX reference mirroring the PyTorch forward exactly."""
    B, C, W, H = x_nchw.shape
    N = W * H
    x_flat = x_nchw.reshape(B, C, N)                                    # (B, C, N)
    q = jnp.einsum('oc,bcn->bon', wq, x_flat) + bq[None, :, None]       # (B, C8, N)
    k = jnp.einsum('oc,bcn->bon', wk, x_flat) + bk[None, :, None]       # (B, C8, N)
    v = jnp.einsum('oc,bcn->bon', wv, x_flat) + bv[None, :, None]       # (B, C, N)
    energy = jnp.einsum('bci,bcj->bij', q, k)                           # (B, N, N)
    attn = jax.nn.softmax(energy, axis=-1)
    out = jnp.einsum('bcj,bij->bci', v, attn)                           # (B, C, N)
    out = out.reshape(B, C, W, H)
    out = gamma[0] * out + x_nchw
    return out, attn


def _make_params(key, C):
    C8 = C // 8
    ks = jax.random.split(key, 6)
    wq = jax.random.normal(ks[0], (C8, C), jnp.float32) * 0.1
    bq = jax.random.normal(ks[1], (C8,), jnp.float32) * 0.1
    wk = jax.random.normal(ks[2], (C8, C), jnp.float32) * 0.1
    bk = jax.random.normal(ks[3], (C8,), jnp.float32) * 0.1
    wv = jax.random.normal(ks[4], (C, C), jnp.float32) * 0.1
    bv = jax.random.normal(ks[5], (C,), jnp.float32) * 0.1
    return wq, bq, wk, bk, wv, bv


if __name__ == "__main__":
    TOL = 1e-3
    key = jax.random.PRNGKey(0)
    k1, k2, k3, k4 = jax.random.split(key, 4)

    # Config 1: module-default gamma (zeros), single query tile (N=64), f32.
    B, C, W, H = 2, 16, 8, 8
    x = jax.random.normal(k1, (B, C, W, H), jnp.float32)
    params = _make_params(k2, C)
    gamma0 = jnp.zeros((1,), jnp.float32)              # nn.Parameter(torch.zeros(1))

    out, attn = self_attn_forward(x, *params, gamma0)
    out = jax.block_until_ready(out)
    attn = jax.block_until_ready(attn)
    out_ref, attn_ref = self_attn_reference(x, *params, gamma0)
    assert jnp.allclose(out, out_ref, atol=TOL, rtol=TOL), "out mismatch (cfg1)"
    assert jnp.allclose(attn, attn_ref, atol=TOL, rtol=TOL), "attention mismatch (cfg1)"

    # out-only path (attention-map output dropped entirely).
    out_only = jax.block_until_ready(
        self_attn_forward(x, *params, gamma0, with_attention=False))
    assert jnp.allclose(out_only, out_ref, atol=TOL, rtol=TOL), "out mismatch (no-attn)"

    # Config 2: non-zero gamma, N=256 -> exercises the (B, N//TILE_Q) grid, f32.
    B2, C2, W2, H2 = 1, 32, 16, 16
    x2 = jax.random.normal(k3, (B2, C2, W2, H2), jnp.float32)
    params2 = _make_params(k4, C2)
    gamma2 = jnp.array([0.7], jnp.float32)

    out2, attn2 = self_attn_forward(x2, *params2, gamma2)
    out2 = jax.block_until_ready(out2)
    attn2 = jax.block_until_ready(attn2)
    out2_ref, attn2_ref = self_attn_reference(x2, *params2, gamma2)
    assert jnp.allclose(out2, out2_ref, atol=TOL, rtol=TOL), "out mismatch (cfg2)"
    assert jnp.allclose(attn2, attn2_ref, atol=TOL, rtol=TOL), "attention mismatch (cfg2)"

    # Config 3: bf16 MXU operands (f32 accumulation / f32 softmax), looser tol.
    out3, attn3 = self_attn_forward(x2, *params2, gamma2, mxu_dtype=jnp.bfloat16)
    out3 = jax.block_until_ready(out3)
    attn3 = jax.block_until_ready(attn3)
    assert jnp.allclose(out3, out2_ref, atol=2e-2, rtol=2e-2), "out mismatch (bf16)"
    assert jnp.allclose(attn3, attn2_ref, atol=2e-2, rtol=2e-2), "attention mismatch (bf16)"

    print("KERNEL_OK")
</pallas_src>

<mosaic_0001>
module attributes {stable_mosaic.version = 11 : i64} {
  func.func @_self_attn_kernel(%arg0: i32, %arg1: i32, %arg2: memref<1xf32, #tpu.memory_space<smem>>, %arg3: memref<1x16x64xf32, #tpu.memory_space<vmem>>, %arg4: memref<1x2x64xf32, #tpu.memory_space<vmem>>, %arg5: memref<1x16x64xf32, #tpu.memory_space<vmem>>, %arg6: memref<2x16xf32, #tpu.memory_space<vmem>>, %arg7: memref<2x1xf32, #tpu.memory_space<vmem>>, %arg8: memref<1x16x64xf32, #tpu.memory_space<vmem>>, %arg9: memref<1x64x64xf32, #tpu.memory_space<vmem>>) attributes {dimension_semantics = [#tpu.dimension_semantics<parallel>, #tpu.dimension_semantics<parallel>], iteration_bounds = array<i64: 2, 1>, scalar_prefetch = 0 : i64, scratch_operands = 0 : i64, tpu.core_type = #tpu.core_type<tc>, window_params = [{transform_indices = @transform_0, window_bounds = array<i64: 1>}, {transform_indices = @transform_1, window_bounds = array<i64: 1, 16, 64>}, {transform_indices = @transform_2, window_bounds = array<i64: 1, 2, 64>}, {transform_indices = @transform_3, window_bounds = array<i64: 1, 16, 64>}, {pipeline_mode = #tpu.pipeline_mode<synchronous>, transform_indices = @transform_4, window_bounds = array<i64: 2, 16>}, {pipeline_mode = #tpu.pipeline_mode<synchronous>, transform_indices = @transform_5, window_bounds = array<i64: 2, 1>}, {transform_indices = @transform_6, window_bounds = array<i64: 1, 16, 64>}, {transform_indices = @transform_7, window_bounds = array<i64: 1, 64, 64>}]} {
    %c0 = arith.constant 0 : index
    %c0_0 = arith.constant 0 : index
    %c0_1 = arith.constant 0 : index
    %0 = vector.load %arg3[%c0, %c0_0, %c0_1] : memref<1x16x64xf32, #tpu.memory_space<vmem>>, vector<1x16x64xf32>
    %1 = vector.shape_cast %0 : vector<1x16x64xf32> to vector<16x64xf32>
    %c0_2 = arith.constant 0 : index
    %c0_3 = arith.constant 0 : index
    %c0_4 = arith.constant 0 : index
    %2 = vector.load %arg4[%c0_2, %c0_3, %c0_4] : memref<1x2x64xf32, #tpu.memory_space<vmem>>, vector<1x2x64xf32>
    %3 = vector.shape_cast %2 : vector<1x2x64xf32> to vector<2x64xf32>
    %c0_5 = arith.constant 0 : index
    %c0_6 = arith.constant 0 : index
    %c0_7 = arith.constant 0 : index
    %4 = vector.load %arg5[%c0_5, %c0_6, %c0_7] : memref<1x16x64xf32, #tpu.memory_space<vmem>>, vector<1x16x64xf32>
    %5 = vector.shape_cast %4 : vector<1x16x64xf32> to vector<16x64xf32>
    %c0_8 = arith.constant 0 : index
    %6 = memref.load %arg2[%c0_8] : memref<1xf32, #tpu.memory_space<smem>>
    %c0_9 = arith.constant 0 : index
    %c0_10 = arith.constant 0 : index
    %7 = vector.load %arg6[%c0_9, %c0_10] : memref<2x16xf32, #tpu.memory_space<vmem>>, vector<2x16xf32>
    %cst = arith.constant dense<0.000000e+00> : vector<2x64xf32>
    %8 = tpu.matmul %7, %1, %cst {dimension_numbers = #tpu.dot_dimension_numbers<[1], [0], [0], [1], [0, 0, 1, 1], [], []>} : vector<2x16xf32>, vector<16x64xf32>, vector<2x64xf32> -> vector<2x64xf32>
    %c0_11 = arith.constant 0 : index
    %c0_12 = arith.constant 0 : index
    %9 = vector.load %arg7[%c0_11, %c0_12] : memref<2x1xf32, #tpu.memory_space<vmem>>, vector<2x1xf32>
    %10 = vector.broadcast %9 : vector<2x1xf32> to vector<2x64xf32>
    %11 = arith.addf %8, %10 : vector<2x64xf32>
    %cst_13 = arith.constant dense<0.000000e+00> : vector<64x64xf32>
    %12 = tpu.matmul %11, %3, %cst_13 {dimension_numbers = #tpu.dot_dimension_numbers<[0], [0], [1], [1], [0, 1, 1, 1], [], []>} : vector<2x64xf32>, vector<2x64xf32>, vector<64x64xf32> -> vector<64x64xf32>
    %cst_14 = arith.constant dense<0xFF800000> : vector<64xf32>
    %13 = vector.multi_reduction <maximumf>, %12, %cst_14 [1] : vector<64x64xf32> to vector<64xf32>
    %14 = vector.shape_cast %13 : vector<64xf32> to vector<64x1xf32>
    %15 = vector.broadcast %14 : vector<64x1xf32> to vector<64x64xf32>
    %16 = arith.subf %12, %15 : vector<64x64xf32>
    %17 = math.exp %16 : vector<64x64xf32>
    %cst_15 = arith.constant dense<0.000000e+00> : vector<64xf32>
    %18 = vector.multi_reduction <add>, %17, %cst_15 [1] : vector<64x64xf32> to vector<64xf32>
    %19 = vector.shape_cast %18 : vector<64xf32> to vector<64x1xf32>
    %cst_16 = arith.constant 1.000000e+00 : f32
    %20 = vector.broadcast %cst_16 : f32 to vector<64x1xf32>
    %21 = arith.divf %20, %19 : vector<64x1xf32>
    %22 = vector.broadcast %21 : vector<64x1xf32> to vector<64x64xf32>
    %23 = arith.mulf %17, %22 : vector<64x64xf32>
    %cst_17 = arith.constant dense<0.000000e+00> : vector<16x64xf32>
    %24 = tpu.matmul %5, %23, %cst_17 {dimension_numbers = #tpu.dot_dimension_numbers<[1], [1], [0], [0], [0, 0, 1, 0], [], []>} : vector<16x64xf32>, vector<64x64xf32>, vector<16x64xf32> -> vector<16x64xf32>
    %25 = vector.broadcast %6 : f32 to vector<16x64xf32>
    %26 = arith.mulf %25, %24 : vector<16x64xf32>
    %27 = arith.addf %26, %1 : vector<16x64xf32>
    %c0_18 = arith.constant 0 : index
    %c0_19 = arith.constant 0 : index
    %c0_20 = arith.constant 0 : index
    %28 = vector.load %arg8[%c0_18, %c0_19, %c0_20] : memref<1x16x64xf32, #tpu.memory_space<vmem>>, vector<1x16x64xf32>
    %29 = vector.shape_cast %28 : vector<1x16x64xf32> to vector<16x64xf32>
    %30 = vector.shape_cast %27 : vector<16x64xf32> to vector<1x16x64xf32>
    tpu.vector_store %arg8[%c0_18, %c0_19, %c0_20], %30 {strides = array<i32>} : memref<1x16x64xf32, #tpu.memory_space<vmem>>, vector<1x16x64xf32>,
    %c0_21 = arith.constant 0 : index
    %c0_22 = arith.constant 0 : index
    %c0_23 = arith.constant 0 : index
    %31 = vector.load %arg9[%c0_21, %c0_22, %c0_23] : memref<1x64x64xf32, #tpu.memory_space<vmem>>, vector<1x64x64xf32>
    %32 = vector.shape_cast %31 : vector<1x64x64xf32> to vector<64x64xf32>
    %33 = vector.shape_cast %23 : vector<64x64xf32> to vector<1x64x64xf32>
    tpu.vector_store %arg9[%c0_21, %c0_22, %c0_23], %33 {strides = array<i32>} : memref<1x64x64xf32, #tpu.memory_space<vmem>>, vector<1x64x64xf32>,
    return
  }
  func.func @transform_0(%arg0: i32, %arg1: i32) -> i32 {
    %c0_i32 = arith.constant 0 : i32
    %c0_i32_0 = arith.constant 0 : i32
    return %c0_i32 : i32
  }
  func.func @transform_1(%arg0: i32, %arg1: i32) -> (i32, i32, i32) {
    %c0_i32 = arith.constant 0 : i32
    %c0_i32_0 = arith.constant 0 : i32
    return %arg0, %c0_i32, %arg1 : i32, i32, i32
  }
  func.func @transform_2(%arg0: i32, %arg1: i32) -> (i32, i32, i32) {
    %c0_i32 = arith.constant 0 : i32
    %c0_i32_0 = arith.constant 0 : i32
    %c0_i32_1 = arith.constant 0 : i32
    return %arg0, %c0_i32, %c0_i32_0 : i32, i32, i32
  }
  func.func @transform_3(%arg0: i32, %arg1: i32) -> (i32, i32, i32) {
    %c0_i32 = arith.constant 0 : i32
    %c0_i32_0 = arith.constant 0 : i32
    %c0_i32_1 = arith.constant 0 : i32
    return %arg0, %c0_i32, %c0_i32_0 : i32, i32, i32
  }
  func.func @transform_4(%arg0: i32, %arg1: i32) -> (i32, i32) {
    %c0_i32 = arith.constant 0 : i32
    %c0_i32_0 = arith.constant 0 : i32
    %c0_i32_1 = arith.constant 0 : i32
    return %c0_i32, %c0_i32_0 : i32, i32
  }
  func.func @transform_5(%arg0: i32, %arg1: i32) -> (i32, i32) {
    %c0_i32 = arith.constant 0 : i32
    %c0_i32_0 = arith.constant 0 : i32
    %c0_i32_1 = arith.constant 0 : i32
    return %c0_i32, %c0_i32_0 : i32, i32
  }
  func.func @transform_6(%arg0: i32, %arg1: i32) -> (i32, i32, i32) {
    %c0_i32 = arith.constant 0 : i32
    %c0_i32_0 = arith.constant 0 : i32
    return %arg0, %c0_i32, %arg1 : i32, i32, i32
  }
  func.func @transform_7(%arg0: i32, %arg1: i32) -> (i32, i32, i32) {
    %c0_i32 = arith.constant 0 : i32
    %c0_i32_0 = arith.constant 0 : i32
    return %arg0, %arg1, %c0_i32 : i32, i32, i32
  }
}

</mosaic_0001>

<llo_original>
// kernel: tpu_custom_call.1
$region0: #{tpu_custom_call.1}
  #allocation0 [shape = 'u32[]', space=smem, size = 0x4, offset = 0x4, fixed_abs, tag = 'smem constant byte address 0x4 - core index']
  #allocation1 [shape = 'u32[144,128]{1,0:T(1,128)}', space=vmem, size = 0x12000, scoped, tag = 'internal scratch']
  #allocation2 [shape = 'f32[1]{0:T(128)S(6)}', space=smem, size = 0x200, scoped, tag = 'scoped memory for tpu_custom_call.1']
  %s0 = inlined_call_operand.<no memory space> [shape: f32[1], index: 0, kind: input, shape index: {}]
  %s1 = inlined_call_operand.hbm [shape: f32[2,16,64], index: 1, kind: input, shape index: {}]
  %s2 = inlined_call_operand.vmem [shape: f32[2,2,64], index: 2, kind: input, shape index: {}]
  %s3 = inlined_call_operand.hbm [shape: f32[2,16,64], index: 3, kind: input, shape index: {}]
  %s4 = inlined_call_operand.vmem [shape: f32[2,16], index: 4, kind: input, shape index: {}]
  %s5 = inlined_call_operand.vmem [shape: f32[2,1], index: 5, kind: input, shape index: {}]
  %s6 = inlined_call_operand.hbm [shape: f32[2,16,64], index: 6, kind: output, shape index: {0}]
  %s7 = inlined_call_operand.hbm [shape: f32[2,64,64], index: 7, kind: output, shape index: {1}]
  %8 = xla_tuple %s6, %s7
  %s9 = sld [smem:[#allocation0]]
  $region73: #{tpu_custom_call.1} parent=0
    _
  %s11 = ssub.s32 1, %s9
  %s12 = scalar_select 0, %s11, %s9
  %13 = sst [smem:[#allocation2]] %s0
  $region1: #{tpu_custom_call.1} parent=0
    #allocation3 [shape = 'u8[16384]{0}', space=vmem, size = 0x4000, scoped, tag = 'input window, operand 1']
    #allocation4 [shape = 's32[2]{0}', space=sflag, size = 0x8, scoped, tag = 'scoped memory for tpu_custom_call.1']
    #allocation5 [shape = 's32[2]{0}', space=sflag, size = 0x8, scoped, tag = 'scoped memory for tpu_custom_call.1']
    #allocation6 [shape = 'u8[16384]{0}', space=vmem, size = 0x4000, scoped, tag = 'input window, operand 3']
    #allocation7 [shape = 's32[2]{0}', space=sflag, size = 0x8, scoped, tag = 'scoped memory for tpu_custom_call.1']
    #allocation8 [shape = 'u8[16384]{0}', space=vmem, size = 0x4000, scoped, tag = 'output window, operand 0']
    #allocation9 [shape = 'u8[65536]{0}', space=vmem, size = 0x10000, scoped, tag = 'output window, operand 1']
    #allocation10 [shape = 's32[2]{0}', space=sflag, size = 0x8, scoped, tag = 'scoped memory for tpu_custom_call.1']
    %14 = vsyncpa [#allocation4], 0
    %s15 = scalar_lea.sflag [#allocation4], 1
    %16 = vsyncpa %s15, 0
    %17 = vsyncpa [#allocation7], 0
    %s18 = scalar_lea.sflag [#allocation7], 1
    %19 = vsyncpa %s18, 0
    %20 = vsyncpa [#allocation5], 0
    %s21 = scalar_lea.sflag [#allocation5], 1
    %22 = vsyncpa %s21, 0
    %23 = vsyncpa [#allocation10], 0
    %s24 = scalar_lea.sflag [#allocation10], 1
    %25 = vsyncpa %s24, 0
    loop: start=0, step=1, limit=4
    $region2: #{tpu_custom_call.1} parent=1 // loop_pre_header
      _
    $region3: #{tpu_custom_call.1} parent=1 // loop_header
      %s27 = sphi 0, %s31
      %p28 = scmp.ge.s32.totalorder %s27, 4
      %s34 = sphi 0, %s46
      %s35 = sphi 0, %s42
      %s36 = sphi 0, %s34
      %s37 = sphi 0, %s35
      %s38 = sphi 0, %s36
      %s39 = sphi 0, %s37
      %s47 = sphi 0, %s47
      %s49 = sphi 0, %s47
      %s50 = sphi 0, %s49
      %s64 = sphi 0, %s50
      %s72 = sphi 0, %s74
      %s75 = sphi 0, %s72
      %s76 = sphi 0, %s75
      %s92 = sphi 0, %s76
      %s98 = sphi 0, %s100
      %s101 = sphi 0, %s98
      %s102 = sphi 0, %s101
      %s118 = sphi 0, %s102
      %s124 = sphi 0, %s126
      %s127 = sphi 0, %s124
      %s128 = sphi 0, %s127
      %s144 = sphi 0, %s128
      %s148 = sphi 0, %s148
      %s150 = sphi 0, %s148
      %s151 = sphi 0, %s150
      %s165 = sphi 0, %s151
      %s169 = sphi 0, %s169
      %s171 = sphi 0, %s169
      %s172 = sphi 0, %s171
      %s186 = sphi 0, %s172
      %s194 = sphi 0, %s196
      %s197 = sphi 0, %s194
      %s198 = sphi 0, %s197
      %s214 = sphi 0, %s198
      %s222 = sphi 0, %s224
      %s225 = sphi 0, %s222
      %s226 = sphi 0, %s225
      %s242 = sphi 0, %s226
    $region4: #{tpu_custom_call.1} parent=1 // loop_header_branch
      %30 = sbr.rel (%p28) target = $region8
    $region5: #{tpu_custom_call.1} parent=1 // loop_body
      %s32 = ssub.s32 %s27, 1
      %s33 = ssub.s32 %s27, 2
      %s40 = sadd.s32 1, %s35
      %p41 = scmp.ge.s32.totalorder %s40, 1
      %s42 = scalar_select %p41, 0, %s40
      %s43 = sadd.s32 1, %s34
      %s44 = scalar_select %p41, %s43, %s34
      %p45 = scmp.ge.s32.totalorder %s44, 2
      %s46 = scalar_select %p45, 0, %s44
      %s48 = sadd.s32 %s47, 1
      %p51 = scmp.eq.s32.totalorder %s27, 1
      %p52 = scmp.ne.s32.totalorder %s47, %s49
      %p53 = scmp.eq.s32.totalorder %s27, 0
      %p54 = por %p52, %p53
      %p55 = scmp.ne.s32.totalorder %s47, %s49
      %p56 = scmp.eq.s32.totalorder %s32, 1
      %p57 = por %p55, %p56
      %p58 = scmp.ne.s32.totalorder %s49, %s50
      %p59 = scmp.eq.s32.totalorder %s32, 0
      %p60 = por %p58, %p59
      %p61 = scmp.ne.s32.totalorder %s49, %s50
      %p62 = scmp.eq.s32.totalorder %s33, 1
      %p63 = por %p61, %p62
      %p65 = scmp.ne.s32.totalorder %s50, %s64
      %p66 = scmp.eq.s32.totalorder %s33, 0
      %p67 = por %p65, %p66
      %s68 = ssub.s32 %s34, %s46
      %s69 = ssub.s32 %s35, %s42
      %s70 = sor.u32 %s68, %s69
      %p71 = scmp.eq.s32.totalorder %s70, 0
      %s73 = sadd.s32 %s72, 1
      %s74 = scalar_select %p71, %s72, %s73
      %p77 = pneg %p71
      %p78 = scmp.eq.s32.totalorder %s27, 1
      %p79 = por %p77, %p78
      %p80 = scmp.ne.s32.totalorder %s72, %s75
      %p81 = scmp.eq.s32.totalorder %s27, 0
      %p82 = por %p80, %p81
      %p83 = scmp.ne.s32.totalorder %s72, %s75
      %p84 = scmp.eq.s32.totalorder %s32, 1
      %p85 = por %p83, %p84
      %p86 = scmp.ne.s32.totalorder %s75, %s76
      %p87 = scmp.eq.s32.totalorder %s32, 0
      %p88 = por %p86, %p87
      %p89 = scmp.ne.s32.totalorder %s75, %s76
      %p90 = scmp.eq.s32.totalorder %s33, 1
      %p91 = por %p89, %p90
      %p93 = scmp.ne.s32.totalorder %s76, %s92
      %p94 = scmp.eq.s32.totalorder %s33, 0
      %p95 = por %p93, %p94
      %s96 = ssub.s32 %s34, %s46
      %p97 = scmp.eq.s32.totalorder %s96, 0
      %s99 = sadd.s32 %s98, 1
      %s100 = scalar_select %p97, %s98, %s99
      %p103 = pneg %p97
      %p104 = scmp.eq.s32.totalorder %s27, 1
      %p105 = por %p103, %p104
      %p106 = scmp.ne.s32.totalorder %s98, %s101
      %p107 = scmp.eq.s32.totalorder %s27, 0
      %p108 = por %p106, %p107
      %p109 = scmp.ne.s32.totalorder %s98, %s101
      %p110 = scmp.eq.s32.totalorder %s32, 1
      %p111 = por %p109, %p110
      %p112 = scmp.ne.s32.totalorder %s101, %s102
      %p113 = scmp.eq.s32.totalorder %s32, 0
      %p114 = por %p112, %p113
      %p115 = scmp.ne.s32.totalorder %s101, %s102
      %p116 = scmp.eq.s32.totalorder %s33, 1
      %p117 = por %p115, %p116
      %p119 = scmp.ne.s32.totalorder %s102, %s118
      %p120 = scmp.eq.s32.totalorder %s33, 0
      %p121 = por %p119, %p120
      %s122 = ssub.s32 %s34, %s46
      %p123 = scmp.eq.s32.totalorder %s122, 0
      %s125 = sadd.s32 %s124, 1
      %s126 = scalar_select %p123, %s124, %s125
      %p129 = pneg %p123
      %p130 = scmp.eq.s32.totalorder %s27, 1
      %p131 = por %p129, %p130
      %p132 = scmp.ne.s32.totalorder %s124, %s127
      %p133 = scmp.eq.s32.totalorder %s27, 0
      %p134 = por %p132, %p133
      %p135 = scmp.ne.s32.totalorder %s124, %s127
      %p136 = scmp.eq.s32.totalorder %s32, 1
      %p137 = por %p135, %p136
      %p138 = scmp.ne.s32.totalorder %s127, %s128
      %p139 = scmp.eq.s32.totalorder %s32, 0
      %p140 = por %p138, %p139
      %p141 = scmp.ne.s32.totalorder %s127, %s128
      %p142 = scmp.eq.s32.totalorder %s33, 1
      %p143 = por %p141, %p142
      %p145 = scmp.ne.s32.totalorder %s128, %s144
      %p146 = scmp.eq.s32.totalorder %s33, 0
      %p147 = por %p145, %p146
      %s149 = sadd.s32 %s148, 1
      %p152 = scmp.eq.s32.totalorder %s27, 1
      %p153 = scmp.ne.s32.totalorder %s148, %s150
      %p154 = scmp.eq.s32.totalorder %s27, 0
      %p155 = por %p153, %p154
      %p156 = scmp.ne.s32.totalorder %s148, %s150
      %p157 = scmp.eq.s32.totalorder %s32, 1
      %p158 = por %p156, %p157
      %p159 = scmp.ne.s32.totalorder %s150, %s151
      %p160 = scmp.eq.s32.totalorder %s32, 0
      %p161 = por %p159, %p160
      %p162 = scmp.ne.s32.totalorder %s150, %s151
      %p163 = scmp.eq.s32.totalorder %s33, 1
      %p164 = por %p162, %p163
      %p166 = scmp.ne.s32.totalorder %s151, %s165
      %p167 = scmp.eq.s32.totalorder %s33, 0
      %p168 = por %p166, %p167
      %s170 = sadd.s32 %s169, 1
      %p173 = scmp.eq.s32.totalorder %s27, 1
      %p174 = scmp.ne.s32.totalorder %s169, %s171
      %p175 = scmp.eq.s32.totalorder %s27, 0
      %p176 = por %p174, %p175
      %p177 = scmp.ne.s32.totalorder %s169, %s171
      %p178 = scmp.eq.s32.totalorder %s32, 1
      %p179 = por %p177, %p178
      %p180 = scmp.ne.s32.totalorder %s171, %s172
      %p181 = scmp.eq.s32.totalorder %s32, 0
      %p182 = por %p180, %p181
      %p183 = scmp.ne.s32.totalorder %s171, %s172
      %p184 = scmp.eq.s32.totalorder %s33, 1
      %p185 = por %p183, %p184
      %p187 = scmp.ne.s32.totalorder %s172, %s186
      %p188 = scmp.eq.s32.totalorder %s33, 0
      %p189 = por %p187, %p188
      %s190 = ssub.s32 %s34, %s46
      %s191 = ssub.s32 %s35, %s42
      %s192 = sor.u32 %s190, %s191
      %p193 = scmp.eq.s32.totalorder %s192, 0
      %s195 = sadd.s32 %s194, 1
      %s196 = scalar_select %p193, %s194, %s195
      %p199 = pneg %p193
      %p200 = scmp.eq.s32.totalorder %s27, 1
      %p201 = por %p199, %p200
      %p202 = scmp.ne.s32.totalorder %s194, %s197
      %p203 = scmp.eq.s32.totalorder %s27, 0
      %p204 = por %p202, %p203
      %p205 = scmp.ne.s32.totalorder %s194, %s197
      %p206 = scmp.eq.s32.totalorder %s32, 1
      %p207 = por %p205, %p206
      %p208 = scmp.ne.s32.totalorder %s197, %s198
      %p209 = scmp.eq.s32.totalorder %s32, 0
      %p210 = por %p208, %p209
      %p211 = scmp.ne.s32.totalorder %s197, %s198
      %p212 = scmp.eq.s32.totalorder %s33, 1
      %p213 = por %p211, %p212
      %p215 = scmp.ne.s32.totalorder %s198, %s214
      %p216 = scmp.eq.s32.totalorder %s33, 0
      %p217 = por %p215, %p216
      %s218 = ssub.s32 %s34, %s46
      %s219 = ssub.s32 %s35, %s42
      %s220 = sor.u32 %s218, %s219
      %p221 = scmp.eq.s32.totalorder %s220, 0
      %s223 = sadd.s32 %s222, 1
      %s224 = scalar_select %p221, %s222, %s223
      %p227 = pneg %p221
      %p228 = scmp.eq.s32.totalorder %s27, 1
      %p229 = por %p227, %p228
      %p230 = scmp.ne.s32.totalorder %s222, %s225
      %p231 = scmp.eq.s32.totalorder %s27, 0
      %p232 = por %p230, %p231
      %p233 = scmp.ne.s32.totalorder %s222, %s225
      %p234 = scmp.eq.s32.totalorder %s32, 1
      %p235 = por %p233, %p234
      %p236 = scmp.ne.s32.totalorder %s225, %s226
      %p237 = scmp.eq.s32.totalorder %s32, 0
      %p238 = por %p236, %p237
      %p239 = scmp.ne.s32.totalorder %s225, %s226
      %p240 = scmp.eq.s32.totalorder %s33, 1
      %p241 = por %p239, %p240
      %p243 = scmp.ne.s32.totalorder %s226, %s242
      %p244 = scmp.eq.s32.totalorder %s33, 0
      %p245 = por %p243, %p244
      %p246 = scmp.le.s32.totalorder 1, %s27
      %p247 = scmp.lt.s32.totalorder %s27, 3
      %p248 = pnand %p246, %p247
      %p249 = pneg %p248
      // Predicated region
      $region9: #{tpu_custom_call.1} parent=5 // pred_check
        _
      $region10: #{tpu_custom_call.1} parent=5 // pred_check_branch
        %251 = sbr.rel (%p248) target = $region12
      $region11: #{tpu_custom_call.1} parent=5 // pred_region
        %s252 = ssub.s32 %s27, 1
        // Predicated region
        $region13: #{tpu_custom_call.1} parent=11 // pred_check
          %p253 = pneg %p60
        $region14: #{tpu_custom_call.1} parent=11 // pred_check_branch
          %255 = sbr.rel (%p253) target = $region16
        $region15: #{tpu_custom_call.1} parent=11 // pred_region
          _
        $region16: #{tpu_custom_call.1} parent=11 // pred_fallthru
          _
        // Predicated region
        $region17: #{tpu_custom_call.1} parent=11 // pred_check
          %p256 = pneg %p161
        $region18: #{tpu_custom_call.1} parent=11 // pred_check_branch
          %258 = sbr.rel (%p256) target = $region20
        $region19: #{tpu_custom_call.1} parent=11 // pred_region
          _
        $region20: #{tpu_custom_call.1} parent=11 // pred_fallthru
          _
        // Predicated region
        $region21: #{tpu_custom_call.1} parent=11 // pred_check
          %p259 = pneg %p182
        $region22: #{tpu_custom_call.1} parent=11 // pred_check_branch
          %261 = sbr.rel (%p259) target = $region24
        $region23: #{tpu_custom_call.1} parent=11 // pred_region
          _
        $region24: #{tpu_custom_call.1} parent=11 // pred_fallthru
          _
      $region12: #{tpu_custom_call.1} parent=5 // pred_fallthru
        _
      %p262 = scmp.lt.s32.totalorder %s27, 2
      // Predicated region
      $region25: #{tpu_custom_call.1} parent=5 // pred_check
        %p263 = pneg %p262
      $region26: #{tpu_custom_call.1} parent=5 // pred_check_branch
        %265 = sbr.rel (%p263) target = $region28
      $region27: #{tpu_custom_call.1} parent=5 // pred_region
        // Predicated region
        $region29: #{tpu_custom_call.1} parent=27 // pred_check
          %p266 = pneg %p82
        $region30: #{tpu_custom_call.1} parent=27 // pred_check_branch
          %268 = sbr.rel (%p266) target = $region32
        $region31: #{tpu_custom_call.1} parent=27 // pred_region
          %s269 = sand.u32 %s72, 1
          %s270 = scalar_lea.sflag [#allocation4], %s269
          %s271 = sand.u32 %s72, 1
          %s272 = smul.addr %s271, 16
          %s273 = scalar_lea.vmem [#allocation3], %s272
          %s275 = ssub.s32 256, 256
          %276 = vsyncadd %s270, %s275
          %s277 = smul.addr %s34, 2
          %s278 = sadd.s32 %s35, %s277
          %s279 = smul.addr %s278, 128
          %s280 = scalar_lea.hbm %s1, %s279
          %s281 = sshll.u32 %s273, 4
          %s282 = int_to_ptr.vmem [resolvable:$true] %s281
          %287 = dma.hbm_to_vmem [thread:$0]  %s280, 256, %s282, %s270, 128, 128, 8
        $region32: #{tpu_custom_call.1} parent=27 // pred_fallthru
          _
        // Predicated region
        $region33: #{tpu_custom_call.1} parent=27 // pred_check
          %p288 = pneg %p108
        $region34: #{tpu_custom_call.1} parent=27 // pred_check_branch
          %290 = sbr.rel (%p288) target = $region36
        $region35: #{tpu_custom_call.1} parent=27 // pred_region
          %p291 = scmp.lt.s32.totalorder %s34, 1
          %s292 = scalar_select %p291, %s34, 1
          %s293 = smul.addr %s292, 2
          %s294 = scalar_lea.vmem %s2, %s293
        $region36: #{tpu_custom_call.1} parent=27 // pred_fallthru
          _
        // Predicated region
        $region37: #{tpu_custom_call.1} parent=27 // pred_check
          %p295 = pneg %p134
        $region38: #{tpu_custom_call.1} parent=27 // pred_check_branch
          %297 = sbr.rel (%p295) target = $region40
        $region39: #{tpu_custom_call.1} parent=27 // pred_region
          %s298 = sand.u32 %s124, 1
          %s299 = scalar_lea.sflag [#allocation7], %s298
          %s300 = sand.u32 %s124, 1
          %s301 = smul.addr %s300, 16
          %s302 = scalar_lea.vmem [#allocation6], %s301
          %s304 = ssub.s32 256, 256
          %305 = vsyncadd %s299, %s304
          %s306 = smul.addr %s34, 2
          %s307 = smul.addr %s306, 128
          %s308 = scalar_lea.hbm %s3, %s307
          %s309 = sshll.u32 %s302, 4
          %s310 = int_to_ptr.vmem [resolvable:$true] %s309
          %315 = dma.hbm_to_vmem [thread:$0]  %s308, 256, %s310, %s299, 128, 128, 8
        $region40: #{tpu_custom_call.1} parent=27 // pred_fallthru
          _
      $region28: #{tpu_custom_call.1} parent=5 // pred_fallthru
        _
      %p316 = scmp.le.s32.totalorder 1, %s27
      %p317 = scmp.lt.s32.totalorder %s27, 3
      %p318 = pnand %p316, %p317
      %p319 = pneg %p318
      // Predicated region
      $region41: #{tpu_custom_call.1} parent=5 // pred_check
        _
      $region42: #{tpu_custom_call.1} parent=5 // pred_check_branch
        %321 = sbr.rel (%p318) target = $region44
      $region43: #{tpu_custom_call.1} parent=5 // pred_region
        %s322 = ssub.s32 %s27, 1
        %s323 = sand.u32 %s75, 1
        %s324 = scalar_lea.sflag [#allocation4], %s323
        %s325 = sand.u32 %s75, 1
        %s326 = smul.addr %s325, 16
        %s327 = scalar_lea.vmem [#allocation3], %s326
        // Predicated region
        $region45: #{tpu_custom_call.1} parent=43 // pred_check
          %p328 = pneg %p88
        $region46: #{tpu_custom_call.1} parent=43 // pred_check_branch
          %330 = sbr.rel (%p328) target = $region48
        $region47: #{tpu_custom_call.1} parent=43 // pred_region
          %331 = dma.done %s324, 256
        $region48: #{tpu_custom_call.1} parent=43 // pred_fallthru
          _
        %s332 = sand.u32 %s127, 1
        %s333 = scalar_lea.sflag [#allocation7], %s332
        %s334 = sand.u32 %s127, 1
        %s335 = smul.addr %s334, 16
        %s336 = scalar_lea.vmem [#allocation6], %s335
        // Predicated region
        $region49: #{tpu_custom_call.1} parent=43 // pred_check
          %p337 = pneg %p140
        $region50: #{tpu_custom_call.1} parent=43 // pred_check_branch
          %339 = sbr.rel (%p337) target = $region52
        $region51: #{tpu_custom_call.1} parent=43 // pred_region
          %340 = dma.done %s333, 256
        $region52: #{tpu_custom_call.1} parent=43 // pred_fallthru
          _
        %p341 = pneg %p60
        %p342 = pneg %p57
        %s343 = sand.u32 %s75, 1
        %s344 = scalar_lea.sflag [#allocation4], %s343
        %s345 = sand.u32 %s75, 1
        %s346 = smul.addr %s345, 16
        %s347 = scalar_lea.vmem [#allocation3], %s346
        %p348 = pneg %p88
        %p349 = pneg %p85
        %p350 = scmp.lt.s32.totalorder %s36, 1
        %s351 = scalar_select %p350, %s36, 1
        %s352 = smul.addr %s351, 2
        %s353 = scalar_lea.vmem %s2, %s352
        %p354 = pneg %p114
        %p355 = pneg %p111
        %s356 = sand.u32 %s127, 1
        %s357 = scalar_lea.sflag [#allocation7], %s356
        %s358 = sand.u32 %s127, 1
        %s359 = smul.addr %s358, 16
        %s360 = scalar_lea.vmem [#allocation6], %s359
        %p361 = pneg %p140
        %p362 = pneg %p137
        %p363 = pneg %p161
        %p364 = pneg %p158
        %p365 = pneg %p182
        %p366 = pneg %p179
        %p367 = pneg %p210
        %p368 = pneg %p207
        %s369 = sand.u32 %s197, 1
        %s370 = scalar_lea.sflag [#allocation5], %s369
        %s371 = sand.u32 %s197, 1
        %s372 = smul.addr %s371, 16
        %s373 = scalar_lea.vmem [#allocation8], %s372
        %p374 = pneg %p238
        %p375 = pneg %p235
        %s376 = sand.u32 %s225, 1
        %s377 = scalar_lea.sflag [#allocation10], %s376
        %s378 = sand.u32 %s225, 1
        %s379 = smul.addr %s378, 64
        %s380 = scalar_lea.vmem [#allocation9], %s379
        %p381 = scmp.lt.s32.totalorder %s36, 1
        %s382 = scalar_select %p381, %s36, 1
        %s383 = smul.addr %s382, 2
        %s384 = scalar_lea.vmem %s2, %s383
        %s385 = smul.u32 8, %s37
        %v386 = vld [vmem:[%s327] sm:$0xff]
        %v387 = vld [vmem:[%s327 + $0x8] sm:$0xff]
        %v388 = vld [vmem:[%s384] sm:$0x3]
        %v389 = vld [vmem:[%s336] sm:$0xff]
        %v390 = vld [vmem:[%s336 + $0x8] sm:$0xff]
        %s391 = sld [smem:[#allocation2]]
        %v392 = vld [vmem:[%s4] sm:$0x3]
        %v393 = vld [vmem:[%s5] sm:$0x3]
        %395 = vset.pattern.permute.xlu0 0
        %396 = vperm.xlu0 %395, %v393
        %v397 = vpop.permute.xlu0 %396
        %vm399 = vcmask 130048
        %v401 = vsel %vm399, %v392, 0
        %403 = vmatprep.subr.mxu0 0.0
        %404 = vmatpush1.msra.mxu0 %v386
        %405 = vmatprep.subr.mxu0 0.0
        %406 = vmatpush1.msra.mxu0 %v387
        %407 = vmatprep.subr.mxu0 0.0
        %408 = vmatpush1.msra.mxu0 0.0
        %409 = vmatprep.subr.mxu0 0.0
        %410 = vmatpush1.msra.mxu0 0.0
        %411 = vmatprep.subr.mxu0 0.0
        %412 = vmatpush1.msra.mxu0 0.0
        %413 = vmatprep.subr.mxu0 0.0
        %414 = vmatpush1.msra.mxu0 0.0
        %415 = vmatprep.subr.mxu0 0.0
        %416 = vmatpush1.msra.mxu0 0.0
        %417 = vmatprep.subr.mxu0 0.0
        %418 = vmatpush1.msra.mxu0 0.0
        %419 = vmatprep.subr.mxu0 0.0
        %420 = vmatpush1.msra.mxu0 0.0
        %421 = vmatprep.subr.mxu0 0.0
        %422 = vmatpush1.msra.mxu0 0.0
        %423 = vmatprep.subr.mxu0 0.0
        %424 = vmatpush1.msra.mxu0 0.0
        %425 = vmatprep.subr.mxu0 0.0
        %426 = vmatpush1.msra.mxu0 0.0
        %427 = vmatprep.subr.mxu0 0.0
        %428 = vmatpush1.msra.mxu0 0.0
        %429 = vmatprep.subr.mxu0 0.0
        %430 = vmatpush1.msra.mxu0 0.0
        %431 = vmatprep.subr.mxu0 0.0
        %432 = vmatpush1.msra.mxu0 0.0
        %433 = vmatprep.subr.mxu0 0.0
        %434 = vmatpush1.msra.mxu0 0.0
        %435 = vmatprep.subr.mxu0 0.0
        %436 = vmatpush1.msra.mxu0 0.0
        %437 = vmatprep.subr.mxu0 0.0
        %438 = vmatpush1.msra.mxu0 0.0
        %439 = vmatprep.subr.mxu0 0.0
        %440 = vmatpush1.msra.mxu0 0.0
        %441 = vmatprep.subr.mxu0 0.0
        %442 = vmatpush1.msra.mxu0 0.0
        %443 = vmatprep.subr.mxu0 0.0
        %444 = vmatpush1.msra.mxu0 0.0
        %445 = vmatprep.subr.mxu0 0.0
        %446 = vmatpush1.msra.mxu0 0.0
        %447 = vmatprep.subr.mxu0 0.0
        %448 = vmatpush1.msra.mxu0 0.0
        %449 = vmatprep.subr.mxu0 0.0
        %450 = vmatpush1.msra.mxu0 0.0
        %451 = vmatprep.subr.mxu0 0.0
        %452 = vmatpush1.msra.mxu0 0.0
        %453 = vmatprep.subr.mxu0 0.0
        %454 = vmatpush1.msra.mxu0 0.0
        %455 = vmatprep.subr.mxu0 0.0
        %456 = vmatpush1.msra.mxu0 0.0
        %457 = vmatprep.subr.mxu0 0.0
        %458 = vmatpush1.msra.mxu0 0.0
        %459 = vmatprep.subr.mxu0 0.0
        %460 = vmatpush1.msra.mxu0 0.0
        %461 = vmatprep.subr.mxu0 0.0
        %462 = vmatpush1.msra.mxu0 0.0
        %463 = vmatprep.subr.mxu0 0.0
        %464 = vmatpush1.msra.mxu0 0.0
        %465 = vmatprep.subr.mxu0 0.0
        %466 = vmatpush1.msra.mxu0 0.0
        %467 = vmatprep.mubr.f32.mxu0 0.0
        %468 = vmatmul.mubr.f32.gmra.mrb[0].mxu0 %v401
        %v469 = vpop.f32.mrb[0].mxu0
        %v470 = vadd.f32 %v397, %v469
        %v471 = vpop.f32.mrb[0].mxu0
        %472 = vdwg.mxu0
        %473 = vxpose.xlu0.b32.start [1/16] %v470, 128
        %474 = vxpose.xlu0.b32.cont [2/16] 0.0, 128
        %475 = vxpose.xlu0.b32.cont [3/16] 0.0, 128
        %476 = vxpose.xlu0.b32.cont [4/16] 0.0, 128
        %477 = vxpose.xlu0.b32.cont [5/16] 0.0, 128
        %478 = vxpose.xlu0.b32.cont [6/16] 0.0, 128
        %479 = vxpose.xlu0.b32.cont [7/16] 0.0, 128
        %480 = vxpose.xlu0.b32.cont [8/16] 0.0, 128
        %481 = vxpose.xlu0.b32.cont [9/16] 0.0, 128
        %482 = vxpose.xlu0.b32.cont [10/16] 0.0, 128
        %483 = vxpose.xlu0.b32.cont [11/16] 0.0, 128
        %484 = vxpose.xlu0.b32.cont [12/16] 0.0, 128
        %485 = vxpose.xlu0.b32.cont [13/16] 0.0, 128
        %486 = vxpose.xlu0.b32.cont [14/16] 0.0, 128
        %487 = vxpose.xlu0.b32.cont [15/16] 0.0, 128
        %488 = vxpose.xlu0.b32.end [16/16] 0.0, 128
        %v489 = vpop.trf.xlu0
        %v490 = vpop.trf.xlu0
        %v491 = vpop.trf.xlu0
        %v492 = vpop.trf.xlu0
        %v493 = vpop.trf.xlu0
        %v494 = vpop.trf.xlu0
        %v495 = vpop.trf.xlu0
        %v496 = vpop.trf.xlu0
        %v497 = vpop.trf.xlu0
        %v498 = vpop.trf.xlu0
        %v499 = vpop.trf.xlu0
        %v500 = vpop.trf.xlu0
        %v501 = vpop.trf.xlu0
        %v502 = vpop.trf.xlu0
        %v503 = vpop.trf.xlu0
        %v504 = vpop.trf.xlu0
        %vm505 = vcmask 15360
        %v507 = vsel %vm505, %v489, 0
        %v510 = vsel %vm505, %v490, 0
        %v513 = vsel %vm505, %v491, 0
        %v516 = vsel %vm505, %v492, 0
        %v519 = vsel %vm505, %v493, 0
        %v522 = vsel %vm505, %v494, 0
        %v525 = vsel %vm505, %v495, 0
        %v528 = vsel %vm505, %v496, 0
        %vm530 = vcmask 1041408
        %v532 = vsel %vm530, %v388, 0
        %534 = vmatprep.subr.mxu0 0.0
        %535 = vmatpush1.msra.mxu0 %v532
        %536 = vmatprep.subr.mxu0 0.0
        %537 = vmatpush1.msra.mxu0 0.0
        %538 = vmatprep.subr.mxu0 0.0
        %539 = vmatpush1.msra.mxu0 0.0
        %540 = vmatprep.subr.mxu0 0.0
        %541 = vmatpush1.msra.mxu0 0.0
        %542 = vmatprep.subr.mxu0 0.0
        %543 = vmatpush1.msra.mxu0 0.0
        %544 = vmatprep.subr.mxu0 0.0
        %545 = vmatpush1.msra.mxu0 0.0
        %546 = vmatprep.subr.mxu0 0.0
        %547 = vmatpush1.msra.mxu0 0.0
        %548 = vmatprep.subr.mxu0 0.0
        %549 = vmatpush1.msra.mxu0 0.0
        %550 = vmatprep.subr.mxu0 0.0
        %551 = vmatpush1.msra.mxu0 0.0
        %552 = vmatprep.subr.mxu0 0.0
        %553 = vmatpush1.msra.mxu0 0.0
        %554 = vmatprep.subr.mxu0 0.0
        %555 = vmatpush1.msra.mxu0 0.0
        %556 = vmatprep.subr.mxu0 0.0
        %557 = vmatpush1.msra.mxu0 0.0
        %558 = vmatprep.subr.mxu0 0.0
        %559 = vmatpush1.msra.mxu0 0.0
        %560 = vmatprep.subr.mxu0 0.0
        %561 = vmatpush1.msra.mxu0 0.0
        %562 = vmatprep.subr.mxu0 0.0
        %563 = vmatpush1.msra.mxu0 0.0
        %564 = vmatprep.subr.mxu0 0.0
        %565 = vmatpush1.msra.mxu0 0.0
        %566 = vmatprep.subr.mxu0 0.0
        %567 = vmatpush1.msra.mxu0 0.0
        %568 = vmatprep.subr.mxu0 0.0
        %569 = vmatpush1.msra.mxu0 0.0
        %570 = vmatprep.subr.mxu0 0.0
        %571 = vmatpush1.msra.mxu0 0.0
        %572 = vmatprep.subr.mxu0 0.0
        %573 = vmatpush1.msra.mxu0 0.0
        %574 = vmatprep.subr.mxu0 0.0
        %575 = vmatpush1.msra.mxu0 0.0
        %576 = vmatprep.subr.mxu0 0.0
        %577 = vmatpush1.msra.mxu0 0.0
        %578 = vmatprep.subr.mxu0 0.0
        %579 = vmatpush1.msra.mxu0 0.0
        %580 = vmatprep.subr.mxu0 0.0
        %581 = vmatpush1.msra.mxu0 0.0
        %582 = vmatprep.subr.mxu0 0.0
        %583 = vmatpush1.msra.mxu0 0.0
        %584 = vmatprep.subr.mxu0 0.0
        %585 = vmatpush1.msra.mxu0 0.0
        %586 = vmatprep.subr.mxu0 0.0
        %587 = vmatpush1.msra.mxu0 0.0
        %588 = vmatprep.subr.mxu0 0.0
        %589 = vmatpush1.msra.mxu0 0.0
        %590 = vmatprep.subr.mxu0 0.0
        %591 = vmatpush1.msra.mxu0 0.0
        %592 = vmatprep.subr.mxu0 0.0
        %593 = vmatpush1.msra.mxu0 0.0
        %594 = vmatprep.subr.mxu0 0.0
        %595 = vmatpush1.msra.mxu0 0.0
        %596 = vmatprep.subr.mxu0 0.0
        %597 = vmatpush1.msra.mxu0 0.0
        %598 = vmatprep.mubr.f32.mxu0 0.0
        %599 = vmatmul.mubr.f32.gmra.mrb[0].mxu0 %v507
        %v600 = vpop.f32.mrb[0].mxu0
        %v601 = vadd.f32 0.0, %v600
        %v602 = vpop.f32.mrb[0].mxu0
        %603 = vmatprep.mubr.f32.mxu0 0.0
        %604 = vmatmul.mubr.f32.gmra.mrb[0].mxu0 %v510
        %v605 = vpop.f32.mrb[0].mxu0
        %v606 = vadd.f32 0.0, %v605
        %v607 = vpop.f32.mrb[0].mxu0
        %608 = vmatprep.mubr.f32.mxu0 0.0
        %609 = vmatmul.mubr.f32.gmra.mrb[0].mxu0 %v513
        %v610 = vpop.f32.mrb[0].mxu0
        %v611 = vadd.f32 0.0, %v610
        %v612 = vpop.f32.mrb[0].mxu0
        %613 = vmatprep.mubr.f32.mxu0 0.0
        %614 = vmatmul.mubr.f32.gmra.mrb[0].mxu0 %v516
        %v615 = vpop.f32.mrb[0].mxu0
        %v616 = vadd.f32 0.0, %v615
        %v617 = vpop.f32.mrb[0].mxu0
        %618 = vmatprep.mubr.f32.mxu0 0.0
        %619 = vmatmul.mubr.f32.gmra.mrb[0].mxu0 %v519
        %v620 = vpop.f32.mrb[0].mxu0
        %v621 = vadd.f32 0.0, %v620
        %v622 = vpop.f32.mrb[0].mxu0
        %623 = vmatprep.mubr.f32.mxu0 0.0
        %624 = vmatmul.mubr.f32.gmra.mrb[0].mxu0 %v522
        %v625 = vpop.f32.mrb[0].mxu0
        %v626 = vadd.f32 0.0, %v625
        %v627 = vpop.f32.mrb[0].mxu0
        %628 = vmatprep.mubr.f32.mxu0 0.0
        %629 = vmatmul.mubr.f32.gmra.mrb[0].mxu0 %v525
        %v630 = vpop.f32.mrb[0].mxu0
        %v631 = vadd.f32 0.0, %v630
        %v632 = vpop.f32.mrb[0].mxu0
        %633 = vmatprep.mubr.f32.mxu0 0.0
        %634 = vmatmul.mubr.f32.gmra.mrb[0].mxu0 %v528
        %v635 = vpop.f32.mrb[0].mxu0
        %v636 = vadd.f32 0.0, %v635
        %v637 = vpop.f32.mrb[0].mxu0
        %638 = vdwg.mxu0
        %vm639 = vcmask 523264
        %v640 = vsel %vm639, %v601, -inf
        %641 = vmax.xlane.f32.xlu0 %v640
        %v642 = vpop.xlane.xlu0 %641
        %v643 = vsel %vm639, %v606, -inf
        %644 = vmax.xlane.f32.xlu0 %v643
        %v645 = vpop.xlane.xlu0 %644
        %v646 = vsel %vm639, %v611, -inf
        %647 = vmax.xlane.f32.xlu0 %v646
        %v648 = vpop.xlane.xlu0 %647
        %v649 = vsel %vm639, %v616, -inf
        %650 = vmax.xlane.f32.xlu0 %v649
        %v651 = vpop.xlane.xlu0 %650
        %v652 = vsel %vm639, %v621, -inf
        %653 = vmax.xlane.f32.xlu0 %v652
        %v654 = vpop.xlane.xlu0 %653
        %v655 = vsel %vm639, %v626, -inf
        %656 = vmax.xlane.f32.xlu0 %v655
        %v657 = vpop.xlane.xlu0 %656
        %v658 = vsel %vm639, %v631, -inf
        %659 = vmax.xlane.f32.xlu0 %v658
        %v660 = vpop.xlane.xlu0 %659
        %v661 = vsel %vm639, %v636, -inf
        %662 = vmax.xlane.f32.xlu0 %v661
        %v663 = vpop.xlane.xlu0 %662
        %v664 = vsub.f32 %v601, %v642
        %v665 = vsub.f32 %v606, %v645
        %v666 = vsub.f32 %v611, %v648
        %v667 = vsub.f32 %v616, %v651
        %v668 = vsub.f32 %v621, %v654
        %v669 = vsub.f32 %v626, %v657
        %v670 = vsub.f32 %v631, %v660
        %v671 = vsub.f32 %v636, %v663
        %v672 = vmul.f32 %v664, 1.442695
        %v673 = vpow.pop %v672
        %v674 = vmul.f32 %v665, 1.442695
        %v675 = vpow.pop %v674
        %v676 = vmul.f32 %v666, 1.442695
        %v677 = vpow.pop %v676
        %v678 = vmul.f32 %v667, 1.442695
        %v679 = vpow.pop %v678
        %v680 = vmul.f32 %v668, 1.442695
        %v681 = vpow.pop %v680
        %v682 = vmul.f32 %v669, 1.442695
        %v683 = vpow.pop %v682
        %v684 = vmul.f32 %v670, 1.442695
        %v685 = vpow.pop %v684
        %v686 = vmul.f32 %v671, 1.442695
        %v687 = vpow.pop %v686
        %v688 = vsel %vm639, %v673, 0.0
        %689 = vadd.xlane.f32.xlu0 %v688
        %v690 = vpop.xlane.xlu0 %689
        %v691 = vsel %vm639, %v675, 0.0
        %692 = vadd.xlane.f32.xlu0 %v691
        %v693 = vpop.xlane.xlu0 %692
        %v694 = vsel %vm639, %v677, 0.0
        %695 = vadd.xlane.f32.xlu0 %v694
        %v696 = vpop.xlane.xlu0 %695
        %v697 = vsel %vm639, %v679, 0.0
        %698 = vadd.xlane.f32.xlu0 %v697
        %v699 = vpop.xlane.xlu0 %698
        %v700 = vsel %vm639, %v681, 0.0
        %701 = vadd.xlane.f32.xlu0 %v700
        %v702 = vpop.xlane.xlu0 %701
        %v703 = vsel %vm639, %v683, 0.0
        %704 = vadd.xlane.f32.xlu0 %v703
        %v705 = vpop.xlane.xlu0 %704
        %v706 = vsel %vm639, %v685, 0.0
        %707 = vadd.xlane.f32.xlu0 %v706
        %v708 = vpop.xlane.xlu0 %707
        %v709 = vsel %vm639, %v687, 0.0
        %710 = vadd.xlane.f32.xlu0 %v709
        %v711 = vpop.xlane.xlu0 %710
        %v712 = vrcp.pop %v690
        %v713 = vmul.f32 1.0, %v712
        %v714 = vrcp.pop %v693
        %v715 = vmul.f32 1.0, %v714
        %v716 = vrcp.pop %v696
        %v717 = vmul.f32 1.0, %v716
        %v718 = vrcp.pop %v699
        %v719 = vmul.f32 1.0, %v718
        %v720 = vrcp.pop %v702
        %v721 = vmul.f32 1.0, %v720
        %v722 = vrcp.pop %v705
        %v723 = vmul.f32 1.0, %v722
        %v724 = vrcp.pop %v708
        %v725 = vmul.f32 1.0, %v724
        %v726 = vrcp.pop %v711
        %v727 = vmul.f32 1.0, %v726
        %v728 = vmul.f32 %v673, %v713
        %v729 = vmul.f32 %v675, %v715
        %v730 = vmul.f32 %v677, %v717
        %v731 = vmul.f32 %v679, %v719
        %v732 = vmul.f32 %v681, %v721
        %v733 = vmul.f32 %v683, %v723
        %v734 = vmul.f32 %v685, %v725
        %v735 = vmul.f32 %v687, %v727
        %v737 = vsel %vm639, %v389, 0
        %v740 = vsel %vm639, %v390, 0
        %v743 = vsel %vm639, %v728, 0
        %v746 = vsel %vm639, %v729, 0
        %v749 = vsel %vm639, %v730, 0
        %v752 = vsel %vm639, %v731, 0
        %v755 = vsel %vm639, %v732, 0
        %v758 = vsel %vm639, %v733, 0
        %v761 = vsel %vm639, %v734, 0
        %v764 = vsel %vm639, %v735, 0
        %766 = vmatprep.subr.mxu0 0.0
        %767 = vmatpush1.xpose.msra.mxu0 %v743
        %768 = vmatprep.subr.mxu0 0.0
        %769 = vmatpush1.xpose.msra.mxu0 %v746
        %770 = vmatprep.subr.mxu0 0.0
        %771 = vmatpush1.xpose.msra.mxu0 %v749
        %772 = vmatprep.subr.mxu0 0.0
        %773 = vmatpush1.xpose.msra.mxu0 %v752
        %774 = vmatprep.subr.mxu0 0.0
        %775 = vmatpush1.xpose.msra.mxu0 %v755
        %776 = vmatprep.subr.mxu0 0.0
        %777 = vmatpush1.xpose.msra.mxu0 %v758
        %778 = vmatprep.subr.mxu0 0.0
        %779 = vmatpush1.xpose.msra.mxu0 %v761
        %780 = vmatprep.subr.mxu0 0.0
        %781 = vmatpush1.xpose.msra.mxu0 %v764
        %782 = vmatprep.subr.mxu0 0.0
        %783 = vmatpush1.xpose.msra.mxu0 0.0
        %784 = vmatprep.subr.mxu0 0.0
        %785 = vmatpush1.xpose.msra.mxu0 0.0
        %786 = vmatprep.subr.mxu0 0.0
        %787 = vmatpush1.xpose.msra.mxu0 0.0
        %788 = vmatprep.subr.mxu0 0.0
        %789 = vmatpush1.xpose.msra.mxu0 0.0
        %790 = vmatprep.subr.mxu0 0.0
        %791 = vmatpush1.xpose.msra.mxu0 0.0
        %792 = vmatprep.subr.mxu0 0.0
        %793 = vmatpush1.xpose.msra.mxu0 0.0
        %794 = vmatprep.subr.mxu0 0.0
        %795 = vmatpush1.xpose.msra.mxu0 0.0
        %796 = vmatprep.subr.mxu0 0.0
        %797 = vmatpush1.xpose.msra.mxu0 0.0
        %798 = vmatprep.subr.mxu0 0.0
        %799 = vmatpush1.xpose.msra.mxu0 0.0
        %800 = vmatprep.subr.mxu0 0.0
        %801 = vmatpush1.xpose.msra.mxu0 0.0
        %802 = vmatprep.subr.mxu0 0.0
        %803 = vmatpush1.xpose.msra.mxu0 0.0
        %804 = vmatprep.subr.mxu0 0.0
        %805 = vmatpush1.xpose.msra.mxu0 0.0
        %806 = vmatprep.subr.mxu0 0.0
        %807 = vmatpush1.xpose.msra.mxu0 0.0
        %808 = vmatprep.subr.mxu0 0.0
        %809 = vmatpush1.xpose.msra.mxu0 0.0
        %810 = vmatprep.subr.mxu0 0.0
        %811 = vmatpush1.xpose.msra.mxu0 0.0
        %812 = vmatprep.subr.mxu0 0.0
        %813 = vmatpush1.xpose.msra.mxu0 0.0
        %814 = vmatprep.subr.mxu0 0.0
        %815 = vmatpush1.xpose.msra.mxu0 0.0
        %816 = vmatprep.subr.mxu0 0.0
        %817 = vmatpush1.xpose.msra.mxu0 0.0
        %818 = vmatprep.subr.mxu0 0.0
        %819 = vmatpush1.xpose.msra.mxu0 0.0
        %820 = vmatprep.subr.mxu0 0.0
        %821 = vmatpush1.xpose.msra.mxu0 0.0
        %822 = vmatprep.subr.mxu0 0.0
        %823 = vmatpush1.xpose.msra.mxu0 0.0
        %824 = vmatprep.subr.mxu0 0.0
        %825 = vmatpush1.xpose.msra.mxu0 0.0
        %826 = vmatprep.subr.mxu0 0.0
        %827 = vmatpush1.xpose.msra.mxu0 0.0
        %828 = vmatprep.subr.mxu0 0.0
        %829 = vmatpush1.xpose.msra.mxu0 0.0
        %830 = vmatprep.mubr.f32.mxu0 0.0
        %831 = vmatmul.mubr.f32.gmra.mrb[0].mxu0 %v737
        %v832 = vpop.f32.mrb[0].mxu0
        %v833 = vadd.f32 0.0, %v832
        %v834 = vpop.f32.mrb[0].mxu0
        %835 = vmatprep.mubr.f32.mxu0 0.0
        %836 = vmatmul.mubr.f32.gmra.mrb[0].mxu0 %v740
        %v837 = vpop.f32.mrb[0].mxu0
        %v838 = vadd.f32 0.0, %v837
        %v839 = vpop.f32.mrb[0].mxu0
        %840 = vdwg.mxu0
        %v841 = vstv %s391
        %v842 = vmul.f32 %v841, %v833
        %v843 = vmul.f32 %v841, %v838
        %v844 = vadd.f32 %v842, %v386
        %v845 = vadd.f32 %v843, %v387
        %846 = vst.msk [vmem:[%s373] sm:$0xff] %vm639, %v844
        %847 = vst.msk [vmem:[%s373 + $0x8] sm:$0xff] %vm639, %v845
        %848 = vst.msk [vmem:[%s380] sm:$0xff] %vm639, %v728
        %849 = vst.msk [vmem:[%s380 + $0x8] sm:$0xff] %vm639, %v729
        %850 = vst.msk [vmem:[%s380 + $0x10] sm:$0xff] %vm639, %v730
        %851 = vst.msk [vmem:[%s380 + $0x18] sm:$0xff] %vm639, %v731
        %852 = vst.msk [vmem:[%s380 + $0x20] sm:$0xff] %vm639, %v732
        %853 = vst.msk [vmem:[%s380 + $0x28] sm:$0xff] %vm639, %v733
        %854 = vst.msk [vmem:[%s380 + $0x30] sm:$0xff] %vm639, %v734
        %855 = vst.msk [vmem:[%s380 + $0x38] sm:$0xff] %vm639, %v735
        %s856 = sand.u32 %s197, 1
        %s857 = scalar_lea.sflag [#allocation5], %s856
        %s858 = sand.u32 %s197, 1
        %s859 = smul.addr %s858, 16
        %s860 = scalar_lea.vmem [#allocation8], %s859
        %s861 = sand.u32 %s225, 1
        %s862 = scalar_lea.sflag [#allocation10], %s861
        %s863 = sand.u32 %s225, 1
        %s864 = smul.addr %s863, 64
        %s865 = scalar_lea.vmem [#allocation9], %s864
        // Predicated region
        $region53: #{tpu_custom_call.1} parent=43 // pred_check
          %p866 = pneg %p207
        $region54: #{tpu_custom_call.1} parent=43 // pred_check_branch
          %868 = sbr.rel (%p866) target = $region56
        $region55: #{tpu_custom_call.1} parent=43 // pred_region
          %s870 = ssub.s32 256, 256
          %871 = vsyncadd %s857, %s870
          %s872 = smul.addr %s36, 2
          %s873 = sadd.s32 %s37, %s872
          %s874 = smul.addr %s873, 128
          %s875 = scalar_lea.hbm %s6, %s874
          %s876 = sshll.u32 %s860, 4
          %s877 = int_to_ptr.vmem [resolvable:$true] %s876
          %882 = dma.vmem_to_hbm [thread:$0]  %s877, 256, %s875, %s857, 128, 128, 8
        $region56: #{tpu_custom_call.1} parent=43 // pred_fallthru
          _
        // Predicated region
        $region57: #{tpu_custom_call.1} parent=43 // pred_check
          %p883 = pneg %p235
        $region58: #{tpu_custom_call.1} parent=43 // pred_check_branch
          %885 = sbr.rel (%p883) target = $region60
        $region59: #{tpu_custom_call.1} parent=43 // pred_region
          %s886 = smul.u32 8, %s37
          %s888 = ssub.s32 1024, 1024
          %889 = vsyncadd %s862, %s888
          %s890 = smul.addr %s36, 8
          %s891 = sadd.s32 %s886, %s890
          %s892 = smul.addr %s891, 128
          %s893 = scalar_lea.hbm %s7, %s892
          %s894 = sshll.u32 %s865, 4
          %s895 = int_to_ptr.vmem [resolvable:$true] %s894
          %900 = dma.vmem_to_hbm [thread:$0]  %s895, 1024, %s893, %s862, 128, 128, 8
        $region60: #{tpu_custom_call.1} parent=43 // pred_fallthru
          _
      $region44: #{tpu_custom_call.1} parent=5 // pred_fallthru
        _
      %p901 = scmp.le.s32.totalorder 2, %s27
      // Predicated region
      $region61: #{tpu_custom_call.1} parent=5 // pred_check
        %p902 = pneg %p901
      $region62: #{tpu_custom_call.1} parent=5 // pred_check_branch
        %904 = sbr.rel (%p902) target = $region64
      $region63: #{tpu_custom_call.1} parent=5 // pred_region
        %s905 = ssub.s32 %s27, 2
        // Predicated region
        $region65: #{tpu_custom_call.1} parent=63 // pred_check
          %p906 = pneg %p213
        $region66: #{tpu_custom_call.1} parent=63 // pred_check_branch
          %908 = sbr.rel (%p906) target = $region68
        $region67: #{tpu_custom_call.1} parent=63 // pred_region
          %s909 = sand.u32 %s198, 1
          %s910 = scalar_lea.sflag [#allocation5], %s909
          %s911 = sand.u32 %s198, 1
          %s912 = smul.addr %s911, 16
          %s913 = scalar_lea.vmem [#allocation8], %s912
          %914 = dma.done %s910, 256
        $region68: #{tpu_custom_call.1} parent=63 // pred_fallthru
          _
        // Predicated region
        $region69: #{tpu_custom_call.1} parent=63 // pred_check
          %p915 = pneg %p241
        $region70: #{tpu_custom_call.1} parent=63 // pred_check_branch
          %917 = sbr.rel (%p915) target = $region72
        $region71: #{tpu_custom_call.1} parent=63 // pred_region
          %s918 = sand.u32 %s226, 1
          %s919 = scalar_lea.sflag [#allocation10], %s918
          %s920 = sand.u32 %s226, 1
          %s921 = smul.addr %s920, 64
          %s922 = scalar_lea.vmem [#allocation9], %s921
          %923 = dma.done %s919, 1024
        $region72: #{tpu_custom_call.1} parent=63 // pred_fallthru
          _
      $region64: #{tpu_custom_call.1} parent=5 // pred_fallthru
        _
    $region6: #{tpu_custom_call.1} parent=1 // loop_footer
      %s31 = sadd.s32 1, %s27
    $region7: #{tpu_custom_call.1} parent=1 // loop_footer_branch
      %26 = sbr.rel target = $region3
    $region8: #{tpu_custom_call.1} parent=1 // loop_exit
      _
    %924 = vsyncpa [#allocation4], 1
    %s925 = scalar_lea.sflag [#allocation4], 1
    %926 = vsyncpa %s925, 1
    %927 = vsyncpa [#allocation7], 1
    %s928 = scalar_lea.sflag [#allocation7], 1
    %929 = vsyncpa %s928, 1
    %930 = vsyncpa [#allocation5], 1
    %s931 = scalar_lea.sflag [#allocation5], 1
    %932 = vsyncpa %s931, 1
    %933 = vsyncpa [#allocation10], 1
    %s934 = scalar_lea.sflag [#allocation10], 1
    %935 = vsyncpa %s934, 1

</llo_original>
